<compile_context>
chip_gen: v7x
topology: tpu7x:2x2x1
jax: 0.10.0
libtpu: 0.0.40
codegen_flags: <defaults>
</compile_context>

<pallas_src>
import functools

import jax
import jax.numpy as jnp
from jax import lax
from jax.experimental import pallas as pl
from jax.experimental.pallas import tpu as pltpu

_INV_SQRT2 = 0.7071067811865476
_VMEM_LIMIT_BYTES = 48 * 1024 * 1024  # < 64 MiB v7x physical; plenty on v5e/v6e.


def _embedfc_kernel(x_ref, w1_ref, b1_ref, w2_ref, b2_ref, o_ref, *,
                    approximate_gelu):
    # Layer 1: packed Linear, lane-dense [tile_p, k_in] @ [k_in, k_out].
    x = x_ref[...]
    h = jnp.dot(x, w1_ref[...], preferred_element_type=jnp.float32) + b1_ref[...]
    if approximate_gelu:
        # tanh-approximate GELU: transcendental lands in the EUP slot instead of
        # the ~20+ VALU ops/element of the erf polynomial (relieves the VALU
        # bottleneck on v6e/v7x).  Slight numerics change vs. PyTorch default.
        h = jax.nn.gelu(h, approximate=True)
    else:
        # Exact erf-based GELU, matching PyTorch nn.GELU() default.
        h = 0.5 * h * (1.0 + lax.erf(h * _INV_SQRT2))
    # Layer 2: packed Linear, lane-dense [tile_p, k_out] @ [k_out, k_out].
    o = jnp.dot(h, w2_ref[...], preferred_element_type=jnp.float32) + b2_ref[...]
    o_ref[...] = o.astype(o_ref.dtype)


def _default_pack():
    """PACK=8 fills the 256x256 MXUs of v6e/v7x; PACK=4 for v5e's 128x128 MXUs."""
    try:
        kind = jax.devices()[0].device_kind.lower()
        if "v5" in kind:
            return 4
    except Exception:
        pass
    return 8


def pack_embedfc_params(w1, b1, w2, b2, *, pack):
    """Build block-diagonal weights / tiled biases once (parameter-only work).

    w1: [input_dim, emb_dim]  (transposed PyTorch Linear weight)
    b1: [emb_dim]
    w2: [emb_dim, emb_dim]    (transposed PyTorch Linear weight)
    b2: [emb_dim]
    """
    emb_dim = w1.shape[1]
    eye = jnp.eye(pack, dtype=w1.dtype)
    w1b = jnp.kron(eye, w1)                         # [pack*input_dim, pack*emb_dim]
    w2b = jnp.kron(eye, w2)                         # [pack*emb_dim,  pack*emb_dim]
    b1b = jnp.tile(b1, pack).reshape(1, pack * emb_dim)
    b2b = jnp.tile(b2, pack).reshape(1, pack * emb_dim)
    return w1b, b1b, w2b, b2b


def embed_fc_packed(x, packed_params, *, input_dim, pack,
                    tile_packed_rows=4096, approximate_gelu=False):
    """EmbedFC forward on x.view(-1, input_dim) with pre-packed parameters."""
    w1b, b1b, w2b, b2b = packed_params
    k_in, k_out = w1b.shape
    assert k_in == pack * input_dim
    emb_dim = k_out // pack

    x2d = x.reshape(-1, input_dim)
    n = x2d.shape[0]

    # Pad only up to a multiple of `pack` (no-op whenever n % pack == 0).
    # Padded rows are exact zeros and are sliced off after the kernel; partial
    # final grid blocks are handled by Pallas boundary masking.
    n_pad = -(-n // pack) * pack
    if n_pad != n:
        x2d = jnp.pad(x2d, ((0, n_pad - n), (0, 0)))
    n_packed = n_pad // pack

    # Packed activations: contiguous reshape, free in XLA (not inside the kernel).
    x_packed = x2d.reshape(n_packed, k_in)

    # Tile selection:
    #  * tiny inputs: a single full-array block (valid: block dims == array dims)
    #  * otherwise: rows a multiple of 8 (sublane alignment) and >= 2 grid steps
    #    so the "parallel" axis can shard across both v7x TensorCores.
    tile_packed_rows = max(8, (tile_packed_rows // 8) * 8)
    if n_packed <= 8:
        tile_p = n_packed
    else:
        target = min(tile_packed_rows, -(-n_packed // 2))   # >= 2 grid steps
        tile_p = min(-(-target // 8) * 8, tile_packed_rows)
    grid = (pl.cdiv(n_packed, tile_p),)

    # VMEM budget (f32, double-buffered): x block is lane-padded to 128 wide
    # -> tile_p*128*4 B/buffer; out block tile_p*k_out*4 B/buffer; weights are
    # VMEM-resident (constant index_map).  At tile_p=4096, pack=8 this is
    # ~12 MiB of pipeline buffers + ~0.3 MiB weights, well under the explicit
    # 48 MiB limit below (and under v7x's 64 MiB physical VMEM).
    kernel = functools.partial(_embedfc_kernel, approximate_gelu=approximate_gelu)

    out_packed = pl.pallas_call(
        kernel,
        out_shape=jax.ShapeDtypeStruct((n_packed, k_out), x2d.dtype),
        grid=grid,
        in_specs=[
            # Streamed activation tiles (double-buffered by Pallas).
            pl.BlockSpec((tile_p, k_in), lambda i: (i, 0)),
            # Parameters: constant block index -> DMA'd once, VMEM-resident.
            pl.BlockSpec((k_in, k_out), lambda i: (0, 0)),
            pl.BlockSpec((1, k_out), lambda i: (0, 0)),
            pl.BlockSpec((k_out, k_out), lambda i: (0, 0)),
            pl.BlockSpec((1, k_out), lambda i: (0, 0)),
        ],
        out_specs=pl.BlockSpec((tile_p, k_out), lambda i: (i, 0)),
        compiler_params=pltpu.CompilerParams(
            dimension_semantics=("parallel",),
            vmem_limit_bytes=_VMEM_LIMIT_BYTES),
    )(x_packed, w1b, b1b, w2b, b2b)

    # Unpack back to [n, emb_dim] (free contiguous reshape); drop pad rows only
    # if padding actually happened.
    out = out_packed.reshape(n_pad, emb_dim)
    return out if n_pad == n else out[:n]


def embed_fc(x, w1, b1, w2, b2, input_dim, *, pack=None,
             tile_packed_rows=4096, approximate_gelu=False):
    """Convenience one-shot wrapper (packs params on every call).

    For repeated calls, use pack_embedfc_params() once + embed_fc_packed().
    """
    if pack is None:
        pack = _default_pack()
    packed = pack_embedfc_params(w1, b1, w2, b2, pack=pack)
    return embed_fc_packed(x, packed, input_dim=input_dim, pack=pack,
                           tile_packed_rows=tile_packed_rows,
                           approximate_gelu=approximate_gelu)


def _reference(x, w1, b1, w2, b2, input_dim):
    x2d = x.reshape(-1, input_dim)
    h = x2d @ w1 + b1
    h = jax.nn.gelu(h, approximate=False)
    return h @ w2 + b2


if __name__ == "__main__":
    input_dim = 4
    emb_dim = 32

    key = jax.random.PRNGKey(0)
    kx, kw1, kb1, kw2, kb2 = jax.random.split(key, 5)

    # Input with extra leading dims; forward flattens to (-1, input_dim) -> (10, 4).
    x = jax.random.normal(kx, (2, 5, input_dim), dtype=jnp.float32)

    # Deterministic parameter init (synthetic; PyTorch-Linear-like uniform).
    bound1 = 1.0 / (input_dim ** 0.5)
    bound2 = 1.0 / (emb_dim ** 0.5)
    w1 = jax.random.uniform(kw1, (input_dim, emb_dim), jnp.float32, -bound1, bound1)
    b1 = jax.random.uniform(kb1, (emb_dim,), jnp.float32, -bound1, bound1)
    w2 = jax.random.uniform(kw2, (emb_dim, emb_dim), jnp.float32, -bound2, bound2)
    b2 = jax.random.uniform(kb2, (emb_dim,), jnp.float32, -bound2, bound2)

    # Hoisted parameter packing (done once), jitted forward on packed params.
    pack = _default_pack()
    packed = pack_embedfc_params(w1, b1, w2, b2, pack=pack)
    fwd = jax.jit(functools.partial(
        embed_fc_packed, input_dim=input_dim, pack=pack))

    out = jax.block_until_ready(fwd(x, packed))

    ref = _reference(x, w1, b1, w2, b2, input_dim)
    assert out.shape == (10, emb_dim), out.shape
    err = float(jnp.max(jnp.abs(out - ref)))
    assert jnp.allclose(out, ref, atol=1e-4, rtol=1e-4), err

    print("KERNEL_OK")
</pallas_src>

<mosaic_0001>
module attributes {stable_mosaic.version = 11 : i64} {
  func.func @_embedfc_kernel(%arg0: i32, %arg1: memref<2x32xf32, #tpu.memory_space<vmem>>, %arg2: memref<32x256xf32, #tpu.memory_space<vmem>>, %arg3: memref<1x256xf32, #tpu.memory_space<vmem>>, %arg4: memref<256x256xf32, #tpu.memory_space<vmem>>, %arg5: memref<1x256xf32, #tpu.memory_space<vmem>>, %arg6: memref<2x256xf32, #tpu.memory_space<vmem>>) attributes {dimension_semantics = [#tpu.dimension_semantics<parallel>], iteration_bounds = array<i64: 1>, scalar_prefetch = 0 : i64, scratch_operands = 0 : i64, tpu.core_type = #tpu.core_type<tc>, window_params = [{transform_indices = @transform_0, window_bounds = array<i64: 2, 32>}, {pipeline_mode = #tpu.pipeline_mode<synchronous>, transform_indices = @transform_1, window_bounds = array<i64: 32, 256>}, {pipeline_mode = #tpu.pipeline_mode<synchronous>, transform_indices = @transform_2, window_bounds = array<i64: 1, 256>}, {pipeline_mode = #tpu.pipeline_mode<synchronous>, transform_indices = @transform_3, window_bounds = array<i64: 256, 256>}, {pipeline_mode = #tpu.pipeline_mode<synchronous>, transform_indices = @transform_4, window_bounds = array<i64: 1, 256>}, {transform_indices = @transform_5, window_bounds = array<i64: 2, 256>}]} {
    %c0 = arith.constant 0 : index
    %c0_0 = arith.constant 0 : index
    %0 = vector.load %arg1[%c0, %c0_0] : memref<2x32xf32, #tpu.memory_space<vmem>>, vector<2x32xf32>
    %c0_1 = arith.constant 0 : index
    %c0_2 = arith.constant 0 : index
    %1 = vector.load %arg2[%c0_1, %c0_2] : memref<32x256xf32, #tpu.memory_space<vmem>>, vector<32x256xf32>
    %cst = arith.constant dense<0.000000e+00> : vector<2x256xf32>
    %2 = tpu.matmul %0, %1, %cst {dimension_numbers = #tpu.dot_dimension_numbers<[1], [0], [0], [1], [0, 0, 1, 1], [], []>} : vector<2x32xf32>, vector<32x256xf32>, vector<2x256xf32> -> vector<2x256xf32>
    %c0_3 = arith.constant 0 : index
    %c0_4 = arith.constant 0 : index
    %3 = vector.load %arg3[%c0_3, %c0_4] : memref<1x256xf32, #tpu.memory_space<vmem>>, vector<1x256xf32>
    %4 = vector.broadcast %3 : vector<1x256xf32> to vector<2x256xf32>
    %5 = arith.addf %2, %4 : vector<2x256xf32>
    %cst_5 = arith.constant 5.000000e-01 : f32
    %6 = vector.broadcast %cst_5 : f32 to vector<2x256xf32>
    %7 = arith.mulf %6, %5 : vector<2x256xf32>
    %cst_6 = arith.constant 0.707106769 : f32
    %8 = vector.broadcast %cst_6 : f32 to vector<2x256xf32>
    %9 = arith.mulf %5, %8 : vector<2x256xf32>
    %10 = math.erf %9 : vector<2x256xf32>
    %cst_7 = arith.constant 1.000000e+00 : f32
    %11 = vector.broadcast %cst_7 : f32 to vector<2x256xf32>
    %12 = arith.addf %11, %10 : vector<2x256xf32>
    %13 = arith.mulf %7, %12 : vector<2x256xf32>
    %c0_8 = arith.constant 0 : index
    %c0_9 = arith.constant 0 : index
    %14 = vector.load %arg4[%c0_8, %c0_9] : memref<256x256xf32, #tpu.memory_space<vmem>>, vector<256x256xf32>
    %cst_10 = arith.constant dense<0.000000e+00> : vector<2x256xf32>
    %15 = tpu.matmul %13, %14, %cst_10 {dimension_numbers = #tpu.dot_dimension_numbers<[1], [0], [0], [1], [0, 0, 1, 1], [], []>} : vector<2x256xf32>, vector<256x256xf32>, vector<2x256xf32> -> vector<2x256xf32>
    %c0_11 = arith.constant 0 : index
    %c0_12 = arith.constant 0 : index
    %16 = vector.load %arg5[%c0_11, %c0_12] : memref<1x256xf32, #tpu.memory_space<vmem>>, vector<1x256xf32>
    %17 = vector.broadcast %16 : vector<1x256xf32> to vector<2x256xf32>
    %18 = arith.addf %15, %17 : vector<2x256xf32>
    %c0_13 = arith.constant 0 : index
    %c0_14 = arith.constant 0 : index
    %19 = vector.load %arg6[%c0_13, %c0_14] : memref<2x256xf32, #tpu.memory_space<vmem>>, vector<2x256xf32>
    tpu.vector_store %arg6[%c0_13, %c0_14], %18 {strides = array<i32>} : memref<2x256xf32, #tpu.memory_space<vmem>>, vector<2x256xf32>,
    return
  }
  func.func @transform_0(%arg0: i32) -> (i32, i32) {
    %c0_i32 = arith.constant 0 : i32
    %c0_i32_0 = arith.constant 0 : i32
    return %arg0, %c0_i32 : i32, i32
  }
  func.func @transform_1(%arg0: i32) -> (i32, i32) {
    %c0_i32 = arith.constant 0 : i32
    %c0_i32_0 = arith.constant 0 : i32
    %c0_i32_1 = arith.constant 0 : i32
    return %c0_i32, %c0_i32_0 : i32, i32
  }
  func.func @transform_2(%arg0: i32) -> (i32, i32) {
    %c0_i32 = arith.constant 0 : i32
    %c0_i32_0 = arith.constant 0 : i32
    %c0_i32_1 = arith.constant 0 : i32
    return %c0_i32, %c0_i32_0 : i32, i32
  }
  func.func @transform_3(%arg0: i32) -> (i32, i32) {
    %c0_i32 = arith.constant 0 : i32
    %c0_i32_0 = arith.constant 0 : i32
    %c0_i32_1 = arith.constant 0 : i32
    return %c0_i32, %c0_i32_0 : i32, i32
  }
  func.func @transform_4(%arg0: i32) -> (i32, i32) {
    %c0_i32 = arith.constant 0 : i32
    %c0_i32_0 = arith.constant 0 : i32
    %c0_i32_1 = arith.constant 0 : i32
    return %c0_i32, %c0_i32_0 : i32, i32
  }
  func.func @transform_5(%arg0: i32) -> (i32, i32) {
    %c0_i32 = arith.constant 0 : i32
    %c0_i32_0 = arith.constant 0 : i32
    return %arg0, %c0_i32 : i32, i32
  }
}

</mosaic_0001>

<llo_original>
// kernel: embed_fc_packed.1
$region0: #{embed_fc_packed.1}
  #allocation0 [shape = 'u32[]', space=smem, size = 0x4, offset = 0x4, fixed_abs, tag = 'smem constant byte address 0x4 - core index']
  #allocation1 [shape = 'u32[144,128]{1,0:T(1,128)}', space=vmem, size = 0x12000, scoped, tag = 'internal scratch']
  %s0 = inlined_call_operand.vmem [shape: f32[2,32], index: 0, kind: input, shape index: {}]
  %s1 = inlined_call_operand.vmem [shape: f32[32,256], index: 1, kind: input, shape index: {}]
  %s2 = inlined_call_operand.vmem [shape: f32[1,256], index: 2, kind: input, shape index: {}]
  %s3 = inlined_call_operand.hbm [shape: f32[256,256], index: 3, kind: input, shape index: {}]
  %s4 = inlined_call_operand.vmem [shape: f32[1,256], index: 4, kind: input, shape index: {}]
  %s5 = inlined_call_operand.vmem [shape: f32[2,256], index: 5, kind: output, shape index: {}]
  %s6 = sld [smem:[#allocation0]]
  $region34: #{embed_fc_packed.1} parent=0
    _
  %s8 = ssub.s32 1, %s6
  %s9 = scalar_select 0, %s8, %s6
  $region1: #{embed_fc_packed.1} parent=0
    #allocation2 [shape = 'u8[262144]{0}', space=vmem, size = 0x40000, scoped, tag = 'input window, operand 3, single buffered']
    #allocation3 [shape = 's32[1]{0}', space=sflag, size = 0x4, scoped, tag = 'scoped memory for embed_fc_packed.1']
    %10 = vsyncpa [#allocation3], 0
    // Predicated region
    $region2: #{embed_fc_packed.1} parent=1 // pred_check
      _
    $region3: #{embed_fc_packed.1} parent=1 // pred_check_branch
      %12 = sbr.rel (0) target = $region5
    $region4: #{embed_fc_packed.1} parent=1 // pred_region
      _
    $region5: #{embed_fc_packed.1} parent=1 // pred_fallthru
      _
    // Predicated region
    $region6: #{embed_fc_packed.1} parent=1 // pred_check
      _
    $region7: #{embed_fc_packed.1} parent=1 // pred_check_branch
      %14 = sbr.rel (0) target = $region9
    $region8: #{embed_fc_packed.1} parent=1 // pred_region
      _
    $region9: #{embed_fc_packed.1} parent=1 // pred_fallthru
      _
    // Predicated region
    $region10: #{embed_fc_packed.1} parent=1 // pred_check
      _
    $region11: #{embed_fc_packed.1} parent=1 // pred_check_branch
      %16 = sbr.rel (0) target = $region13
    $region12: #{embed_fc_packed.1} parent=1 // pred_region
      _
    $region13: #{embed_fc_packed.1} parent=1 // pred_fallthru
      _
    // Predicated region
    $region14: #{embed_fc_packed.1} parent=1 // pred_check
      _
    $region15: #{embed_fc_packed.1} parent=1 // pred_check_branch
      %18 = sbr.rel (0) target = $region17
    $region16: #{embed_fc_packed.1} parent=1 // pred_region
      %s20 = ssub.s32 8192, 8192
      %21 = vsyncadd [#allocation3], %s20
      %s22 = sshll.u32 [#allocation2], 4
      %s23 = int_to_ptr.vmem [resolvable:$true] %s22
      %28 = dma.hbm_to_vmem [thread:$0]  %s3, 8192, %s23, [#allocation3], 256, 256, 16
    $region17: #{embed_fc_packed.1} parent=1 // pred_fallthru
      _
    // Predicated region
    $region18: #{embed_fc_packed.1} parent=1 // pred_check
      _
    $region19: #{embed_fc_packed.1} parent=1 // pred_check_branch
      %30 = sbr.rel (0) target = $region21
    $region20: #{embed_fc_packed.1} parent=1 // pred_region
      _
    $region21: #{embed_fc_packed.1} parent=1 // pred_fallthru
      _
    // Predicated region
    $region22: #{embed_fc_packed.1} parent=1 // pred_check
      _
    $region23: #{embed_fc_packed.1} parent=1 // pred_check_branch
      %32 = sbr.rel (0) target = $region25
    $region24: #{embed_fc_packed.1} parent=1 // pred_region
      %33 = dma.done [#allocation3], 8192
    $region25: #{embed_fc_packed.1} parent=1 // pred_fallthru
      _
    %v34 = vld [vmem:[%s0] sm:$0x3]
    %v35 = vld [vmem:[%s1] sm:$0xff]
    %v36 = vld [vmem:[%s1 + $0x8] sm:$0xff]
    %v37 = vld [vmem:[%s1 + $0x10] sm:$0xff]
    %v38 = vld [vmem:[%s1 + $0x18] sm:$0xff]
    %v39 = vld [vmem:[%s1 + $0x20] sm:$0xff]
    %v40 = vld [vmem:[%s1 + $0x28] sm:$0xff]
    %v41 = vld [vmem:[%s1 + $0x30] sm:$0xff]
    %v42 = vld [vmem:[%s1 + $0x38] sm:$0xff]
    %v43 = vld [vmem:[%s2] sm:$0x3]
    %v45 = vlaneseq
    %v46 = vshrl.u32 %v45, 7
    %v47 = vsub.s32 0, %v46
    %v48 = vrot.slane %v43, %v47
    %v49 = vlaneseq
    %v50 = vshrl.u32 %v49, 7
    %v51 = vsub.s32 1, %v50
    %v52 = vrot.slane %v43, %v51
    %vm55 = vcmask 261120
    %v57 = vsel %vm55, %v34, 0
    %59 = vmatprep.subr.mxu0 %v36
    %60 = vmatpush1.msra.mxu0 %v35
    %61 = vmatprep.subr.mxu0 %v38
    %62 = vmatpush1.msra.mxu0 %v37
    %63 = vmatprep.subr.mxu0 %v40
    %64 = vmatpush1.msra.mxu0 %v39
    %65 = vmatprep.subr.mxu0 %v42
    %66 = vmatpush1.msra.mxu0 %v41
    %67 = vmatprep.subr.mxu0 0.0
    %68 = vmatpush1.msra.mxu0 0.0
    %69 = vmatprep.subr.mxu0 0.0
    %70 = vmatpush1.msra.mxu0 0.0
    %71 = vmatprep.subr.mxu0 0.0
    %72 = vmatpush1.msra.mxu0 0.0
    %73 = vmatprep.subr.mxu0 0.0
    %74 = vmatpush1.msra.mxu0 0.0
    %75 = vmatprep.subr.mxu0 0.0
    %76 = vmatpush1.msra.mxu0 0.0
    %77 = vmatprep.subr.mxu0 0.0
    %78 = vmatpush1.msra.mxu0 0.0
    %79 = vmatprep.subr.mxu0 0.0
    %80 = vmatpush1.msra.mxu0 0.0
    %81 = vmatprep.subr.mxu0 0.0
    %82 = vmatpush1.msra.mxu0 0.0
    %83 = vmatprep.subr.mxu0 0.0
    %84 = vmatpush1.msra.mxu0 0.0
    %85 = vmatprep.subr.mxu0 0.0
    %86 = vmatpush1.msra.mxu0 0.0
    %87 = vmatprep.subr.mxu0 0.0
    %88 = vmatpush1.msra.mxu0 0.0
    %89 = vmatprep.subr.mxu0 0.0
    %90 = vmatpush1.msra.mxu0 0.0
    %91 = vmatprep.subr.mxu0 0.0
    %92 = vmatpush1.msra.mxu0 0.0
    %93 = vmatprep.subr.mxu0 0.0
    %94 = vmatpush1.msra.mxu0 0.0
    %95 = vmatprep.subr.mxu0 0.0
    %96 = vmatpush1.msra.mxu0 0.0
    %97 = vmatprep.subr.mxu0 0.0
    %98 = vmatpush1.msra.mxu0 0.0
    %99 = vmatprep.subr.mxu0 0.0
    %100 = vmatpush1.msra.mxu0 0.0
    %101 = vmatprep.subr.mxu0 0.0
    %102 = vmatpush1.msra.mxu0 0.0
    %103 = vmatprep.subr.mxu0 0.0
    %104 = vmatpush1.msra.mxu0 0.0
    %105 = vmatprep.subr.mxu0 0.0
    %106 = vmatpush1.msra.mxu0 0.0
    %107 = vmatprep.subr.mxu0 0.0
    %108 = vmatpush1.msra.mxu0 0.0
    %109 = vmatprep.subr.mxu0 0.0
    %110 = vmatpush1.msra.mxu0 0.0
    %111 = vmatprep.subr.mxu0 0.0
    %112 = vmatpush1.msra.mxu0 0.0
    %113 = vmatprep.subr.mxu0 0.0
    %114 = vmatpush1.msra.mxu0 0.0
    %115 = vmatprep.subr.mxu0 0.0
    %116 = vmatpush1.msra.mxu0 0.0
    %117 = vmatprep.subr.mxu0 0.0
    %118 = vmatpush1.msra.mxu0 0.0
    %119 = vmatprep.subr.mxu0 0.0
    %120 = vmatpush1.msra.mxu0 0.0
    %121 = vmatprep.subr.mxu0 0.0
    %122 = vmatpush1.msra.mxu0 0.0
    %123 = vmatprep.mubr.f32.mxu0 0.0
    %124 = vmatmul.mubr.f32.gmra.mrb[0].mxu0 %v57
    %v125 = vpop.f32.mrb[0].mxu0
    %v126 = vadd.f32 %v48, %v125
    %v127 = vpop.f32.mrb[0].mxu0
    %v128 = vadd.f32 %v52, %v127
    %129 = vdwg.mxu0
    %v130 = vmul.f32 %v126, 0.5
    %v131 = vmul.f32 %v128, 0.5
    %v132 = vmul.f32 %v126, 0.70710677
    %v133 = vmul.f32 %v128, 0.70710677
    %v134 = verf.f32.pop %v132
    %v135 = verf.f32.pop %v133
    %v136 = vadd.f32 %v134, 1.0
    %v137 = vadd.f32 %v135, 1.0
    %v138 = vmul.f32 %v130, %v136
    %v139 = vmul.f32 %v131, %v137
    %v140 = vld [vmem:[#allocation2] sm:$0xff]
    %v141 = vld [vmem:[#allocation2 + $0x8] sm:$0xff]
    %v142 = vld [vmem:[#allocation2 + $0x10] sm:$0xff]
    %v143 = vld [vmem:[#allocation2 + $0x18] sm:$0xff]
    %v144 = vld [vmem:[#allocation2 + $0x20] sm:$0xff]
    %v145 = vld [vmem:[#allocation2 + $0x28] sm:$0xff]
    %v146 = vld [vmem:[#allocation2 + $0x30] sm:$0xff]
    %v147 = vld [vmem:[#allocation2 + $0x38] sm:$0xff]
    %v148 = vld [vmem:[#allocation2 + $0x40] sm:$0xff]
    %v149 = vld [vmem:[#allocation2 + $0x48] sm:$0xff]
    %v150 = vld [vmem:[#allocation2 + $0x50] sm:$0xff]
    %v151 = vld [vmem:[#allocation2 + $0x58] sm:$0xff]
    %v152 = vld [vmem:[#allocation2 + $0x60] sm:$0xff]
    %v153 = vld [vmem:[#allocation2 + $0x68] sm:$0xff]
    %v154 = vld [vmem:[#allocation2 + $0x70] sm:$0xff]
    %v155 = vld [vmem:[#allocation2 + $0x78] sm:$0xff]
    %v156 = vld [vmem:[#allocation2 + $0x80] sm:$0xff]
    %v157 = vld [vmem:[#allocation2 + $0x88] sm:$0xff]
    %v158 = vld [vmem:[#allocation2 + $0x90] sm:$0xff]
    %v159 = vld [vmem:[#allocation2 + $0x98] sm:$0xff]
    %v160 = vld [vmem:[#allocation2 + $0xa0] sm:$0xff]
    %v161 = vld [vmem:[#allocation2 + $0xa8] sm:$0xff]
    %v162 = vld [vmem:[#allocation2 + $0xb0] sm:$0xff]
    %v163 = vld [vmem:[#allocation2 + $0xb8] sm:$0xff]
    %v164 = vld [vmem:[#allocation2 + $0xc0] sm:$0xff]
    %v165 = vld [vmem:[#allocation2 + $0xc8] sm:$0xff]
    %v166 = vld [vmem:[#allocation2 + $0xd0] sm:$0xff]
    %v167 = vld [vmem:[#allocation2 + $0xd8] sm:$0xff]
    %v168 = vld [vmem:[#allocation2 + $0xe0] sm:$0xff]
    %v169 = vld [vmem:[#allocation2 + $0xe8] sm:$0xff]
    %v170 = vld [vmem:[#allocation2 + $0xf0] sm:$0xff]
    %v171 = vld [vmem:[#allocation2 + $0xf8] sm:$0xff]
    %v172 = vld [vmem:[#allocation2 + $0x100] sm:$0xff]
    %v173 = vld [vmem:[#allocation2 + $0x108] sm:$0xff]
    %v174 = vld [vmem:[#allocation2 + $0x110] sm:$0xff]
    %v175 = vld [vmem:[#allocation2 + $0x118] sm:$0xff]
    %v176 = vld [vmem:[#allocation2 + $0x120] sm:$0xff]
    %v177 = vld [vmem:[#allocation2 + $0x128] sm:$0xff]
    %v178 = vld [vmem:[#allocation2 + $0x130] sm:$0xff]
    %v179 = vld [vmem:[#allocation2 + $0x138] sm:$0xff]
    %v180 = vld [vmem:[#allocation2 + $0x140] sm:$0xff]
    %v181 = vld [vmem:[#allocation2 + $0x148] sm:$0xff]
    %v182 = vld [vmem:[#allocation2 + $0x150] sm:$0xff]
    %v183 = vld [vmem:[#allocation2 + $0x158] sm:$0xff]
    %v184 = vld [vmem:[#allocation2 + $0x160] sm:$0xff]
    %v185 = vld [vmem:[#allocation2 + $0x168] sm:$0xff]
    %v186 = vld [vmem:[#allocation2 + $0x170] sm:$0xff]
    %v187 = vld [vmem:[#allocation2 + $0x178] sm:$0xff]
    %v188 = vld [vmem:[#allocation2 + $0x180] sm:$0xff]
    %v189 = vld [vmem:[#allocation2 + $0x188] sm:$0xff]
    %v190 = vld [vmem:[#allocation2 + $0x190] sm:$0xff]
    %v191 = vld [vmem:[#allocation2 + $0x198] sm:$0xff]
    %v192 = vld [vmem:[#allocation2 + $0x1a0] sm:$0xff]
    %v193 = vld [vmem:[#allocation2 + $0x1a8] sm:$0xff]
    %v194 = vld [vmem:[#allocation2 + $0x1b0] sm:$0xff]
    %v195 = vld [vmem:[#allocation2 + $0x1b8] sm:$0xff]
    %v196 = vld [vmem:[#allocation2 + $0x1c0] sm:$0xff]
    %v197 = vld [vmem:[#allocation2 + $0x1c8] sm:$0xff]
    %v198 = vld [vmem:[#allocation2 + $0x1d0] sm:$0xff]
    %v199 = vld [vmem:[#allocation2 + $0x1d8] sm:$0xff]
    %v200 = vld [vmem:[#allocation2 + $0x1e0] sm:$0xff]
    %v201 = vld [vmem:[#allocation2 + $0x1e8] sm:$0xff]
    %v202 = vld [vmem:[#allocation2 + $0x1f0] sm:$0xff]
    %v203 = vld [vmem:[#allocation2 + $0x1f8] sm:$0xff]
    %v204 = vld [vmem:[%s4] sm:$0x3]
    %v206 = vlaneseq
    %v207 = vshrl.u32 %v206, 7
    %v208 = vsub.s32 0, %v207
    %v209 = vrot.slane %v204, %v208
    %v210 = vlaneseq
    %v211 = vshrl.u32 %v210, 7
    %v212 = vsub.s32 1, %v211
    %v213 = vrot.slane %v204, %v212
    %216 = vmatprep.subr.mxu0 %v141
    %217 = vmatpush1.msra.mxu0 %v140
    %218 = vmatprep.subr.mxu0 %v143
    %219 = vmatpush1.msra.mxu0 %v142
    %220 = vmatprep.subr.mxu0 %v145
    %221 = vmatpush1.msra.mxu0 %v144
    %222 = vmatprep.subr.mxu0 %v147
    %223 = vmatpush1.msra.mxu0 %v146
    %224 = vmatprep.subr.mxu0 %v149
    %225 = vmatpush1.msra.mxu0 %v148
    %226 = vmatprep.subr.mxu0 %v151
    %227 = vmatpush1.msra.mxu0 %v150
    %228 = vmatprep.subr.mxu0 %v153
    %229 = vmatpush1.msra.mxu0 %v152
    %230 = vmatprep.subr.mxu0 %v155
    %231 = vmatpush1.msra.mxu0 %v154
    %232 = vmatprep.subr.mxu0 %v157
    %233 = vmatpush1.msra.mxu0 %v156
    %234 = vmatprep.subr.mxu0 %v159
    %235 = vmatpush1.msra.mxu0 %v158
    %236 = vmatprep.subr.mxu0 %v161
    %237 = vmatpush1.msra.mxu0 %v160
    %238 = vmatprep.subr.mxu0 %v163
    %239 = vmatpush1.msra.mxu0 %v162
    %240 = vmatprep.subr.mxu0 %v165
    %241 = vmatpush1.msra.mxu0 %v164
    %242 = vmatprep.subr.mxu0 %v167
    %243 = vmatpush1.msra.mxu0 %v166
    %244 = vmatprep.subr.mxu0 %v169
    %245 = vmatpush1.msra.mxu0 %v168
    %246 = vmatprep.subr.mxu0 %v171
    %247 = vmatpush1.msra.mxu0 %v170
    %248 = vmatprep.subr.mxu0 %v173
    %249 = vmatpush1.msra.mxu0 %v172
    %250 = vmatprep.subr.mxu0 %v175
    %251 = vmatpush1.msra.mxu0 %v174
    %252 = vmatprep.subr.mxu0 %v177
    %253 = vmatpush1.msra.mxu0 %v176
    %254 = vmatprep.subr.mxu0 %v179
    %255 = vmatpush1.msra.mxu0 %v178
    %256 = vmatprep.subr.mxu0 %v181
    %257 = vmatpush1.msra.mxu0 %v180
    %258 = vmatprep.subr.mxu0 %v183
    %259 = vmatpush1.msra.mxu0 %v182
    %260 = vmatprep.subr.mxu0 %v185
    %261 = vmatpush1.msra.mxu0 %v184
    %262 = vmatprep.subr.mxu0 %v187
    %263 = vmatpush1.msra.mxu0 %v186
    %264 = vmatprep.subr.mxu0 %v189
    %265 = vmatpush1.msra.mxu0 %v188
    %266 = vmatprep.subr.mxu0 %v191
    %267 = vmatpush1.msra.mxu0 %v190
    %268 = vmatprep.subr.mxu0 %v193
    %269 = vmatpush1.msra.mxu0 %v192
    %270 = vmatprep.subr.mxu0 %v195
    %271 = vmatpush1.msra.mxu0 %v194
    %272 = vmatprep.subr.mxu0 %v197
    %273 = vmatpush1.msra.mxu0 %v196
    %274 = vmatprep.subr.mxu0 %v199
    %275 = vmatpush1.msra.mxu0 %v198
    %276 = vmatprep.subr.mxu0 %v201
    %277 = vmatpush1.msra.mxu0 %v200
    %278 = vmatprep.subr.mxu0 %v203
    %279 = vmatpush1.msra.mxu0 %v202
    %280 = vmatprep.mubr.f32.mxu0 %v139
    %281 = vmatmul.mubr.f32.gmra.mrb[0].mxu0 %v138
    %v282 = vpop.f32.mrb[0].mxu0
    %v283 = vadd.f32 %v209, %v282
    %v284 = vpop.f32.mrb[0].mxu0
    %v285 = vadd.f32 %v213, %v284
    %286 = vdwg.mxu0
    %v289 = vcombine.low %v283, %v285
    %v291 = vunpack.c.l.s4 1983009808
    %v292 = vunpack.c.0.s8 %v291
    %v293 = vlaneseq
    %v294 = vshrl.u32 %v293, 7
    %v295 = vsub.s32 %v292, %v294
    %v296 = vrot.slane %v289, %v295
    %298 = vst [vmem:[%s5] sm:$0xf] %v296
    // Predicated region
    $region26: #{embed_fc_packed.1} parent=1 // pred_check
      _
    $region27: #{embed_fc_packed.1} parent=1 // pred_check_branch
      %300 = sbr.rel (0) target = $region29
    $region28: #{embed_fc_packed.1} parent=1 // pred_region
      _
    $region29: #{embed_fc_packed.1} parent=1 // pred_fallthru
      _
    // Predicated region
    $region30: #{embed_fc_packed.1} parent=1 // pred_check
      _
    $region31: #{embed_fc_packed.1} parent=1 // pred_check_branch
      %302 = sbr.rel (0) target = $region33
    $region32: #{embed_fc_packed.1} parent=1 // pred_region
      _
    $region33: #{embed_fc_packed.1} parent=1 // pred_fallthru
      _
    %303 = vsyncpa [#allocation3], 1

</llo_original>
